<compile_context>
chip_gen: v7x
topology: tpu7x:2x2x1
jax: 0.10.0
libtpu: 0.0.40
codegen_flags: <defaults>
</compile_context>

<pallas_src>
import functools

import jax
import jax.numpy as jnp
from jax.experimental import pallas as pl
from jax.experimental.pallas import tpu as pltpu

_VMEM_LIMIT = 64 * 1024 * 1024   # safe on v5e/v6e (128 MiB physical) and v7x (64 MiB)


def _pick_tile_m(M, max_tile=1024):
    """Largest power-of-two row tile dividing M, preferring >=2 grid steps (v7x megacore)."""
    cands = [t for t in (1024, 512, 256, 128, 64, 32, 16, 8) if t <= max_tile]
    for t in cands:
        if M % t == 0 and M // t >= 2:
            return t
    for t in cands:
        if M % t == 0:
            return t
    return M                      # fallback: single full-extent block


# ---------------------------------------------------------------------------
# Kernel 1: fused 1x1 conv (matmul) + folded-BN affine + optional SiLU   (cv1)
#   x: (tile_m, Cin)  w: (Cin, Cout)  scale/bias: (1, Cout) f32  out: (tile_m, Cout)
# ---------------------------------------------------------------------------
def _pointwise_kernel(act, x_ref, w_ref, s_ref, b_ref, o_ref):
    y = jnp.dot(x_ref[...], w_ref[...], preferred_element_type=jnp.float32)
    y = y * s_ref[...] + b_ref[...]
    if act:
        y = y * jax.nn.sigmoid(y)          # SiLU (f32 on the VPU/EUP)
    o_ref[...] = y.astype(o_ref.dtype)


def pointwise_conv(x2d, w, scale, bias, *, act, tile_m):
    M, cin = x2d.shape
    cout = w.shape[1]
    return pl.pallas_call(
        functools.partial(_pointwise_kernel, act),
        out_shape=jax.ShapeDtypeStruct((M, cout), x2d.dtype),
        grid_spec=pltpu.PrefetchScalarGridSpec(
            num_scalar_prefetch=0,
            grid=(M // tile_m,),
            in_specs=[
                pl.BlockSpec((tile_m, cin), lambda i: (i, 0)),
                pl.BlockSpec((cin, cout), lambda i: (0, 0)),
                pl.BlockSpec((1, cout), lambda i: (0, 0)),
                pl.BlockSpec((1, cout), lambda i: (0, 0)),
            ],
            out_specs=pl.BlockSpec((tile_m, cout), lambda i: (i, 0)),
        ),
        compiler_params=pltpu.CompilerParams(
            dimension_semantics=("parallel",),
            vmem_limit_bytes=_VMEM_LIMIT,
        ),
    )(x2d, w, scale, bias)


# ---------------------------------------------------------------------------
# Kernel 2: fused 3x3 conv (stride 1, pad 1) + folded BN + SiLU (+ optional residual)
# One grid step per batch element.  The 1-pixel halo is built inside VMEM (no HBM pad
# round-trip, no zeros-residual DMA); the 9 taps accumulate into a VMEM f32 scratch.
# ---------------------------------------------------------------------------
def _conv3x3_kernel(H, W, add_res, *refs):
    if add_res:
        x_ref, w_ref, s_ref, b_ref, r_ref, o_ref, xp_ref, acc_ref = refs
    else:
        x_ref, w_ref, s_ref, b_ref, o_ref, xp_ref, acc_ref = refs
        r_ref = None
    cin = x_ref.shape[-1]
    cout = w_ref.shape[-1]

    # Build the zero-padded (H+2, W+2, cin) image in VMEM: zero the 1-pixel border,
    # then write the interior.  (Border + interior are rewritten every grid step, so
    # there is no cross-step scratch dependence.)
    zrow = jnp.zeros((1, W + 2, cin), xp_ref.dtype)
    zcol = jnp.zeros((H + 2, 1, cin), xp_ref.dtype)
    xp_ref[0:1, :, :] = zrow
    xp_ref[H + 1:H + 2, :, :] = zrow
    xp_ref[:, 0:1, :] = zcol
    xp_ref[:, W + 1:W + 2, :] = zcol
    xp_ref[1:H + 1, 1:W + 1, :] = x_ref[0]

    # 9 shifted-tap matmuls on the MXU, accumulated in a VMEM f32 scratch.
    for dy in range(3):
        for dx in range(3):
            patch = xp_ref[dy:dy + H, dx:dx + W, :].reshape(H * W, cin)
            contrib = jnp.dot(patch, w_ref[dy, dx, :, :],
                              preferred_element_type=jnp.float32)
            if dy == 0 and dx == 0:
                acc_ref[...] = contrib
            else:
                acc_ref[...] += contrib

    y = acc_ref[...] * s_ref[...] + b_ref[...]
    y = y * jax.nn.sigmoid(y)                       # SiLU
    y = y.reshape(H, W, cout)
    if add_res:
        y = y + r_ref[0].astype(jnp.float32)        # bottleneck shortcut
    o_ref[...] = y.reshape(1, H, W, cout).astype(o_ref.dtype)


def conv3x3_bn_silu(x, w, scale, bias, residual=None):
    N, H, W, cin = x.shape
    cout = w.shape[-1]
    add_res = residual is not None

    in_specs = [
        pl.BlockSpec((1, H, W, cin), lambda b: (b, 0, 0, 0)),
        pl.BlockSpec((3, 3, cin, cout), lambda b: (0, 0, 0, 0)),
        pl.BlockSpec((1, cout), lambda b: (0, 0)),
        pl.BlockSpec((1, cout), lambda b: (0, 0)),
    ]
    args = [x, w, scale, bias]
    if add_res:
        in_specs.append(pl.BlockSpec((1, H, W, cout), lambda b: (b, 0, 0, 0)))
        args.append(residual)

    return pl.pallas_call(
        functools.partial(_conv3x3_kernel, H, W, add_res),
        out_shape=jax.ShapeDtypeStruct((N, H, W, cout), x.dtype),
        grid_spec=pltpu.PrefetchScalarGridSpec(
            num_scalar_prefetch=0,
            grid=(N,),
            in_specs=in_specs,
            out_specs=pl.BlockSpec((1, H, W, cout), lambda b: (b, 0, 0, 0)),
            scratch_shapes=[
                pltpu.VMEM((H + 2, W + 2, cin), x.dtype),     # padded-image halo buffer
                pltpu.VMEM((H * W, cout), jnp.float32),       # f32 accumulator
            ],
        ),
        compiler_params=pltpu.CompilerParams(
            dimension_semantics=("parallel",),
            vmem_limit_bytes=_VMEM_LIMIT,
        ),
    )(*args)


# ---------------------------------------------------------------------------
# Kernel 3: fully fused CSP head:
#   y1 = h @ cv3_w ; y2 = x @ cv2_w ; BN(cat(y1,y2)) + SiLU ; cv4 (1x1 + BN + SiLU)
# The channel concat never touches HBM: BN is applied per-half and cv4 is computed as
# two matmuls against the top/bottom halves of cv4_w summed into one f32 accumulator.
# ---------------------------------------------------------------------------
def _csp_head_kernel(h_ref, x_ref, w3_ref, w2_ref, s1_ref, b1_ref, s2_ref, b2_ref,
                     w4a_ref, w4b_ref, s4_ref, b4_ref, o_ref):
    y1 = jnp.dot(h_ref[...], w3_ref[...], preferred_element_type=jnp.float32)
    y2 = jnp.dot(x_ref[...], w2_ref[...], preferred_element_type=jnp.float32)
    h1 = y1 * s1_ref[...] + b1_ref[...]
    h1 = h1 * jax.nn.sigmoid(h1)                    # SiLU after the standalone BN (half 1)
    h2 = y2 * s2_ref[...] + b2_ref[...]
    h2 = h2 * jax.nn.sigmoid(h2)                    # SiLU after the standalone BN (half 2)
    cd = w4a_ref.dtype                              # feed the MXU in the storage dtype
    y = jnp.dot(h1.astype(cd), w4a_ref[...], preferred_element_type=jnp.float32)
    y = y + jnp.dot(h2.astype(cd), w4b_ref[...], preferred_element_type=jnp.float32)
    y = y * s4_ref[...] + b4_ref[...]
    y = y * jax.nn.sigmoid(y)                       # cv4 SiLU
    o_ref[...] = y.astype(o_ref.dtype)


def csp_head_fused(h2d, x2d, w3, w2, s1, b1, s2, b2, w4a, w4b, s4, b4, *, tile_m):
    M, c_ = h2d.shape
    c1 = x2d.shape[1]
    c2 = w4a.shape[1]
    row = lambda i: (i, 0)
    full = lambda i: (0, 0)
    return pl.pallas_call(
        _csp_head_kernel,
        out_shape=jax.ShapeDtypeStruct((M, c2), h2d.dtype),
        grid_spec=pltpu.PrefetchScalarGridSpec(
            num_scalar_prefetch=0,
            grid=(M // tile_m,),
            in_specs=[
                pl.BlockSpec((tile_m, c_), row),
                pl.BlockSpec((tile_m, c1), row),
                pl.BlockSpec((c_, c_), full),
                pl.BlockSpec((c1, c_), full),
                pl.BlockSpec((1, c_), full),
                pl.BlockSpec((1, c_), full),
                pl.BlockSpec((1, c_), full),
                pl.BlockSpec((1, c_), full),
                pl.BlockSpec((c_, c2), full),
                pl.BlockSpec((c_, c2), full),
                pl.BlockSpec((1, c2), full),
                pl.BlockSpec((1, c2), full),
            ],
            out_specs=pl.BlockSpec((tile_m, c2), row),
        ),
        compiler_params=pltpu.CompilerParams(
            dimension_semantics=("parallel",),
            vmem_limit_bytes=_VMEM_LIMIT,
        ),
    )(h2d, x2d, w3, w2, s1, b1, s2, b2, w4a, w4b, s4, b4)


# ---------------------------------------------------------------------------
# BottleneckCSP forward (NCHW in / NCHW out, matching PyTorch)
# ---------------------------------------------------------------------------
def bottleneck_csp_forward(x_nchw, p, *, compute_dtype=jnp.float32):
    cast = lambda a: a.astype(compute_dtype)

    x = cast(jnp.transpose(x_nchw, (0, 2, 3, 1)))          # -> NHWC, storage dtype
    N, H, W, c1 = x.shape
    M = N * H * W
    x2 = x.reshape(M, c1)
    tile_m = _pick_tile_m(M)

    # cv1 = Conv(c1, c_, 1): 1x1 conv + BN + SiLU
    h = pointwise_conv(x2, cast(p["cv1_w"]), p["cv1_s"], p["cv1_b"],
                       act=True, tile_m=tile_m)
    c_ = h.shape[-1]
    himg = h.reshape(N, H, W, c_)

    # m = Sequential(Bottleneck(c_, c_, shortcut, e=1.0) x n)
    for (w1, s1, b1, w2, s2, b2) in p["m"]:
        t = conv3x3_bn_silu(himg, cast(w1), s1, b1)                    # bottleneck.cv1
        himg = conv3x3_bn_silu(t, cast(w2), s2, b2, residual=himg)     # .cv2 + shortcut

    # cv3 / cv2 / concat / bn / SiLU / cv4 — one fused kernel.
    bn_s, bn_b, w4 = p["bn_s"], p["bn_b"], p["cv4_w"]
    out = csp_head_fused(
        himg.reshape(M, c_), x2,
        cast(p["cv3_w"]), cast(p["cv2_w"]),
        bn_s[:, :c_], bn_b[:, :c_], bn_s[:, c_:], bn_b[:, c_:],
        cast(w4[:c_]), cast(w4[c_:]),
        p["cv4_s"], p["cv4_b"],
        tile_m=tile_m)

    out = out.reshape(N, H, W, -1)
    return jnp.transpose(out, (0, 3, 1, 2))                 # -> NCHW


# ---------------------------------------------------------------------------
# Deterministic parameter construction (inference-mode BN folded to scale/bias)
# ---------------------------------------------------------------------------
def _fold_bn(key, c, eps=1e-5):
    kg, kb, km, kv = jax.random.split(key, 4)
    gamma = jax.random.uniform(kg, (c,), jnp.float32, 0.5, 1.5)
    beta = 0.1 * jax.random.normal(kb, (c,), jnp.float32)
    mean = 0.1 * jax.random.normal(km, (c,), jnp.float32)
    var = jax.random.uniform(kv, (c,), jnp.float32, 0.5, 1.5)
    scale = gamma / jnp.sqrt(var + eps)
    bias = beta - mean * scale
    return scale.reshape(1, c), bias.reshape(1, c)


def make_params(key, c1, c2, n=1, e=0.5):
    c_ = int(c2 * e)
    keys = iter(jax.random.split(key, 8 + 4 * n))
    p = {}
    p["cv1_w"] = 0.2 * jax.random.normal(next(keys), (c1, c_), jnp.float32)
    p["cv1_s"], p["cv1_b"] = _fold_bn(next(keys), c_)
    p["cv2_w"] = 0.2 * jax.random.normal(next(keys), (c1, c_), jnp.float32)
    p["cv3_w"] = 0.2 * jax.random.normal(next(keys), (c_, c_), jnp.float32)
    p["cv4_w"] = 0.2 * jax.random.normal(next(keys), (2 * c_, c2), jnp.float32)
    p["cv4_s"], p["cv4_b"] = _fold_bn(next(keys), c2)
    p["bn_s"], p["bn_b"] = _fold_bn(next(keys), 2 * c_)
    p["m"] = []
    for _ in range(n):
        w1 = 0.2 * jax.random.normal(next(keys), (3, 3, c_, c_), jnp.float32)   # HWIO
        s1, b1 = _fold_bn(next(keys), c_)
        w2 = 0.2 * jax.random.normal(next(keys), (3, 3, c_, c_), jnp.float32)
        s2, b2 = _fold_bn(next(keys), c_)
        p["m"].append((w1, s1, b1, w2, s2, b2))
    return p


# ---------------------------------------------------------------------------
# Pure-JAX reference (for correctness check)
# ---------------------------------------------------------------------------
def _silu(x):
    return x * jax.nn.sigmoid(x)


def ref_forward(x_nchw, p):
    x = jnp.transpose(x_nchw, (0, 2, 3, 1))

    def pw(h, w, s=None, b=None, act=False):
        y = jnp.einsum("nhwc,cd->nhwd", h, w)
        if s is not None:
            y = y * s.reshape(-1) + b.reshape(-1)
        return _silu(y) if act else y

    def c3(h, w, s, b):
        y = jax.lax.conv_general_dilated(
            h, w, (1, 1), "SAME", dimension_numbers=("NHWC", "HWIO", "NHWC"))
        return _silu(y * s.reshape(-1) + b.reshape(-1))

    h = pw(x, p["cv1_w"], p["cv1_s"], p["cv1_b"], act=True)
    for (w1, s1, b1, w2, s2, b2) in p["m"]:
        h = h + c3(c3(h, w1, s1, b1), w2, s2, b2)
    y1 = pw(h, p["cv3_w"])
    y2 = pw(x, p["cv2_w"])
    ycat = jnp.concatenate([y1, y2], axis=-1)
    ycat = _silu(ycat * p["bn_s"].reshape(-1) + p["bn_b"].reshape(-1))
    out = pw(ycat, p["cv4_w"], p["cv4_s"], p["cv4_b"], act=True)
    return jnp.transpose(out, (0, 3, 1, 2))


if __name__ == "__main__":
    key = jax.random.PRNGKey(0)
    kx, kp = jax.random.split(key)

    N, c1, c2, H, W, n = 2, 8, 8, 16, 16, 1
    x = jax.random.normal(kx, (N, c1, H, W), jnp.float32)      # NCHW, like PyTorch
    params = make_params(kp, c1, c2, n=n, e=0.5)

    ref = jax.block_until_ready(ref_forward(x, params))

    # f32 path: strict numerical check against the pure-JAX reference.
    out = jax.block_until_ready(bottleneck_csp_forward(x, params))
    assert out.shape == (N, c2, H, W), out.shape
    assert jnp.allclose(out, ref, atol=1e-3, rtol=1e-3), float(jnp.max(jnp.abs(out - ref)))

    # bf16 storage / MXU-feed path (f32 accumulation & element-wise math): sanity check.
    out_bf16 = jax.block_until_ready(
        bottleneck_csp_forward(x, params, compute_dtype=jnp.bfloat16))
    assert out_bf16.shape == (N, c2, H, W), out_bf16.shape
    assert jnp.allclose(out_bf16.astype(jnp.float32), ref, atol=0.25, rtol=0.25), \
        float(jnp.max(jnp.abs(out_bf16.astype(jnp.float32) - ref)))

    print("KERNEL_OK")
</pallas_src>

<mosaic_0001>
module attributes {stable_mosaic.version = 11 : i64} {
  func.func @_pointwise_kernel(%arg0: i32, %arg1: memref<256x8xf32, #tpu.memory_space<vmem>>, %arg2: memref<8x4xf32, #tpu.memory_space<vmem>>, %arg3: memref<1x4xf32, #tpu.memory_space<vmem>>, %arg4: memref<1x4xf32, #tpu.memory_space<vmem>>, %arg5: memref<256x4xf32, #tpu.memory_space<vmem>>) attributes {dimension_semantics = [#tpu.dimension_semantics<parallel>], iteration_bounds = array<i64: 2>, scalar_prefetch = 0 : i64, scratch_operands = 0 : i64, tpu.core_type = #tpu.core_type<tc>, window_params = [{transform_indices = @transform_0, window_bounds = array<i64: 256, 8>}, {pipeline_mode = #tpu.pipeline_mode<synchronous>, transform_indices = @transform_1, window_bounds = array<i64: 8, 4>}, {pipeline_mode = #tpu.pipeline_mode<synchronous>, transform_indices = @transform_2, window_bounds = array<i64: 1, 4>}, {pipeline_mode = #tpu.pipeline_mode<synchronous>, transform_indices = @transform_3, window_bounds = array<i64: 1, 4>}, {transform_indices = @transform_4, window_bounds = array<i64: 256, 4>}]} {
    %c0 = arith.constant 0 : index
    %c0_0 = arith.constant 0 : index
    %0 = vector.load %arg1[%c0, %c0_0] : memref<256x8xf32, #tpu.memory_space<vmem>>, vector<256x8xf32>
    %c0_1 = arith.constant 0 : index
    %c0_2 = arith.constant 0 : index
    %1 = vector.load %arg2[%c0_1, %c0_2] : memref<8x4xf32, #tpu.memory_space<vmem>>, vector<8x4xf32>
    %cst = arith.constant dense<0.000000e+00> : vector<256x4xf32>
    %2 = tpu.matmul %0, %1, %cst {dimension_numbers = #tpu.dot_dimension_numbers<[1], [0], [0], [1], [0, 0, 1, 1], [], []>} : vector<256x8xf32>, vector<8x4xf32>, vector<256x4xf32> -> vector<256x4xf32>
    %c0_3 = arith.constant 0 : index
    %c0_4 = arith.constant 0 : index
    %3 = vector.load %arg3[%c0_3, %c0_4] : memref<1x4xf32, #tpu.memory_space<vmem>>, vector<1x4xf32>
    %4 = vector.broadcast %3 : vector<1x4xf32> to vector<256x4xf32>
    %5 = arith.mulf %2, %4 : vector<256x4xf32>
    %c0_5 = arith.constant 0 : index
    %c0_6 = arith.constant 0 : index
    %6 = vector.load %arg4[%c0_5, %c0_6] : memref<1x4xf32, #tpu.memory_space<vmem>>, vector<1x4xf32>
    %7 = vector.broadcast %6 : vector<1x4xf32> to vector<256x4xf32>
    %8 = arith.addf %5, %7 : vector<256x4xf32>
    %9 = arith.negf %8 : vector<256x4xf32>
    %10 = math.exp %9 : vector<256x4xf32>
    %cst_7 = arith.constant 1.000000e+00 : f32
    %11 = vector.broadcast %cst_7 : f32 to vector<256x4xf32>
    %12 = arith.addf %11, %10 : vector<256x4xf32>
    %13 = arith.divf %11, %12 : vector<256x4xf32>
    %14 = arith.mulf %8, %13 : vector<256x4xf32>
    %c0_8 = arith.constant 0 : index
    %c0_9 = arith.constant 0 : index
    %15 = vector.load %arg5[%c0_8, %c0_9] : memref<256x4xf32, #tpu.memory_space<vmem>>, vector<256x4xf32>
    tpu.vector_store %arg5[%c0_8, %c0_9], %14 {strides = array<i32>} : memref<256x4xf32, #tpu.memory_space<vmem>>, vector<256x4xf32>,
    return
  }
  func.func @transform_0(%arg0: i32) -> (i32, i32) {
    %c0_i32 = arith.constant 0 : i32
    %c0_i32_0 = arith.constant 0 : i32
    return %arg0, %c0_i32 : i32, i32
  }
  func.func @transform_1(%arg0: i32) -> (i32, i32) {
    %c0_i32 = arith.constant 0 : i32
    %c0_i32_0 = arith.constant 0 : i32
    %c0_i32_1 = arith.constant 0 : i32
    return %c0_i32, %c0_i32_0 : i32, i32
  }
  func.func @transform_2(%arg0: i32) -> (i32, i32) {
    %c0_i32 = arith.constant 0 : i32
    %c0_i32_0 = arith.constant 0 : i32
    %c0_i32_1 = arith.constant 0 : i32
    return %c0_i32, %c0_i32_0 : i32, i32
  }
  func.func @transform_3(%arg0: i32) -> (i32, i32) {
    %c0_i32 = arith.constant 0 : i32
    %c0_i32_0 = arith.constant 0 : i32
    %c0_i32_1 = arith.constant 0 : i32
    return %c0_i32, %c0_i32_0 : i32, i32
  }
  func.func @transform_4(%arg0: i32) -> (i32, i32) {
    %c0_i32 = arith.constant 0 : i32
    %c0_i32_0 = arith.constant 0 : i32
    return %arg0, %c0_i32 : i32, i32
  }
}

</mosaic_0001>

<llo_original>
// kernel: tpu_custom_call.1
$region0: #{tpu_custom_call.1}
  #allocation0 [shape = 'u32[]', space=smem, size = 0x4, offset = 0x4, fixed_abs, tag = 'smem constant byte address 0x4 - core index']
  #allocation1 [shape = 'u32[144,128]{1,0:T(1,128)}', space=vmem, size = 0x12000, scoped, tag = 'internal scratch']
  %s0 = inlined_call_operand.hbm [shape: f32[512,8], index: 0, kind: input, shape index: {}]
  %s1 = inlined_call_operand.hbm [shape: f32[8,4], index: 1, kind: input, shape index: {}]
  %s2 = inlined_call_operand.hbm [shape: f32[1,4], index: 2, kind: input, shape index: {}]
  %s3 = inlined_call_operand.hbm [shape: f32[1,4], index: 3, kind: input, shape index: {}]
  %s4 = inlined_call_operand.hbm [shape: f32[512,4], index: 4, kind: output, shape index: {}]
  %s5 = sld [smem:[#allocation0]]
  $region65: #{tpu_custom_call.1} parent=0
    _
  %s7 = ssub.s32 1, %s5
  %s8 = scalar_select 0, %s7, %s5
  $region1: #{tpu_custom_call.1} parent=0
    #allocation2 [shape = 'u8[262144]{0}', space=vmem, size = 0x40000, scoped, tag = 'input window, operand 0']
    #allocation3 [shape = 's32[2]{0}', space=sflag, size = 0x8, scoped, tag = 'scoped memory for tpu_custom_call.1']
    #allocation4 [shape = 's32[2]{0}', space=sflag, size = 0x8, scoped, tag = 'scoped memory for tpu_custom_call.1']
    #allocation5 [shape = 'u8[4096]{0}', space=vmem, size = 0x1000, scoped, tag = 'input window, operand 1, single buffered']
    #allocation6 [shape = 's32[1]{0}', space=sflag, size = 0x4, scoped, tag = 'scoped memory for tpu_custom_call.1']
    #allocation7 [shape = 'u8[512]{0}', space=vmem, size = 0x400, scoped, tag = 'input window, operand 2, single buffered']
    #allocation8 [shape = 'u8[512]{0}', space=vmem, size = 0x400, scoped, tag = 'input window, operand 3, single buffered']
    #allocation9 [shape = 's32[1]{0}', space=sflag, size = 0x4, scoped, tag = 'scoped memory for tpu_custom_call.1']
    #allocation10 [shape = 'u8[262144]{0}', space=vmem, size = 0x40000, scoped, tag = 'output window, operand 0']
    %9 = vsyncpa [#allocation3], 0
    %s10 = scalar_lea.sflag [#allocation3], 1
    %11 = vsyncpa %s10, 0
    %12 = vsyncpa [#allocation6], 0
    %13 = vsyncpa [#allocation9], 0
    %14 = vsyncpa [#allocation4], 0
    %s15 = scalar_lea.sflag [#allocation4], 1
    %16 = vsyncpa %s15, 0
    loop: start=0, step=1, limit=4
    $region2: #{tpu_custom_call.1} parent=1 // loop_pre_header
      _
    $region3: #{tpu_custom_call.1} parent=1 // loop_header
      %s18 = sphi 0, %s22
      %p19 = scmp.ge.s32.totalorder %s18, 4
      %s28 = sphi 0, %s30
      %s31 = sphi 0, %s28
      %s32 = sphi 0, %s31
      %s48 = sphi 0, %s32
      %s52 = sphi 0, %s52
      %s54 = sphi 0, %s52
      %s55 = sphi 0, %s54
      %s69 = sphi 0, %s55
      %s73 = sphi 0, %s73
      %s75 = sphi 0, %s73
      %s76 = sphi 0, %s75
      %s90 = sphi 0, %s76
      %s94 = sphi 0, %s94
      %s96 = sphi 0, %s94
      %s97 = sphi 0, %s96
      %s111 = sphi 0, %s97
      %s117 = sphi 0, %s119
      %s120 = sphi 0, %s117
      %s121 = sphi 0, %s120
      %s137 = sphi 0, %s121
    $region4: #{tpu_custom_call.1} parent=1 // loop_header_branch
      %21 = sbr.rel (%p19) target = $region8
    $region5: #{tpu_custom_call.1} parent=1 // loop_body
      %s23 = ssub.s32 %s18, 1
      %s24 = ssub.s32 %s18, 2
      %s25 = sadd.s32 %s18, 1
      %s26 = ssub.s32 %s18, %s25
      %p27 = scmp.eq.s32.totalorder %s26, 0
      %s29 = sadd.s32 %s28, 1
      %s30 = scalar_select %p27, %s28, %s29
      %p33 = pneg %p27
      %p34 = scmp.eq.s32.totalorder %s18, 1
      %p35 = por %p33, %p34
      %p36 = scmp.ne.s32.totalorder %s28, %s31
      %p37 = scmp.eq.s32.totalorder %s18, 0
      %p38 = por %p36, %p37
      %p39 = scmp.ne.s32.totalorder %s28, %s31
      %p40 = scmp.eq.s32.totalorder %s23, 1
      %p41 = por %p39, %p40
      %p42 = scmp.ne.s32.totalorder %s31, %s32
      %p43 = scmp.eq.s32.totalorder %s23, 0
      %p44 = por %p42, %p43
      %p45 = scmp.ne.s32.totalorder %s31, %s32
      %p46 = scmp.eq.s32.totalorder %s24, 1
      %p47 = por %p45, %p46
      %p49 = scmp.ne.s32.totalorder %s32, %s48
      %p50 = scmp.eq.s32.totalorder %s24, 0
      %p51 = por %p49, %p50
      %s53 = sadd.s32 %s52, 1
      %p56 = scmp.eq.s32.totalorder %s18, 1
      %p57 = scmp.ne.s32.totalorder %s52, %s54
      %p58 = scmp.eq.s32.totalorder %s18, 0
      %p59 = por %p57, %p58
      %p60 = scmp.ne.s32.totalorder %s52, %s54
      %p61 = scmp.eq.s32.totalorder %s23, 1
      %p62 = por %p60, %p61
      %p63 = scmp.ne.s32.totalorder %s54, %s55
      %p64 = scmp.eq.s32.totalorder %s23, 0
      %p65 = por %p63, %p64
      %p66 = scmp.ne.s32.totalorder %s54, %s55
      %p67 = scmp.eq.s32.totalorder %s24, 1
      %p68 = por %p66, %p67
      %p70 = scmp.ne.s32.totalorder %s55, %s69
      %p71 = scmp.eq.s32.totalorder %s24, 0
      %p72 = por %p70, %p71
      %s74 = sadd.s32 %s73, 1
      %p77 = scmp.eq.s32.totalorder %s18, 1
      %p78 = scmp.ne.s32.totalorder %s73, %s75
      %p79 = scmp.eq.s32.totalorder %s18, 0
      %p80 = por %p78, %p79
      %p81 = scmp.ne.s32.totalorder %s73, %s75
      %p82 = scmp.eq.s32.totalorder %s23, 1
      %p83 = por %p81, %p82
      %p84 = scmp.ne.s32.totalorder %s75, %s76
      %p85 = scmp.eq.s32.totalorder %s23, 0
      %p86 = por %p84, %p85
      %p87 = scmp.ne.s32.totalorder %s75, %s76
      %p88 = scmp.eq.s32.totalorder %s24, 1
      %p89 = por %p87, %p88
      %p91 = scmp.ne.s32.totalorder %s76, %s90
      %p92 = scmp.eq.s32.totalorder %s24, 0
      %p93 = por %p91, %p92
      %s95 = sadd.s32 %s94, 1
      %p98 = scmp.eq.s32.totalorder %s18, 1
      %p99 = scmp.ne.s32.totalorder %s94, %s96
      %p100 = scmp.eq.s32.totalorder %s18, 0
      %p101 = por %p99, %p100
      %p102 = scmp.ne.s32.totalorder %s94, %s96
      %p103 = scmp.eq.s32.totalorder %s23, 1
      %p104 = por %p102, %p103
      %p105 = scmp.ne.s32.totalorder %s96, %s97
      %p106 = scmp.eq.s32.totalorder %s23, 0
      %p107 = por %p105, %p106
      %p108 = scmp.ne.s32.totalorder %s96, %s97
      %p109 = scmp.eq.s32.totalorder %s24, 1
      %p110 = por %p108, %p109
      %p112 = scmp.ne.s32.totalorder %s97, %s111
      %p113 = scmp.eq.s32.totalorder %s24, 0
      %p114 = por %p112, %p113
      %s115 = ssub.s32 %s18, %s25
      %p116 = scmp.eq.s32.totalorder %s115, 0
      %s118 = sadd.s32 %s117, 1
      %s119 = scalar_select %p116, %s117, %s118
      %p122 = pneg %p116
      %p123 = scmp.eq.s32.totalorder %s18, 1
      %p124 = por %p122, %p123
      %p125 = scmp.ne.s32.totalorder %s117, %s120
      %p126 = scmp.eq.s32.totalorder %s18, 0
      %p127 = por %p125, %p126
      %p128 = scmp.ne.s32.totalorder %s117, %s120
      %p129 = scmp.eq.s32.totalorder %s23, 1
      %p130 = por %p128, %p129
      %p131 = scmp.ne.s32.totalorder %s120, %s121
      %p132 = scmp.eq.s32.totalorder %s23, 0
      %p133 = por %p131, %p132
      %p134 = scmp.ne.s32.totalorder %s120, %s121
      %p135 = scmp.eq.s32.totalorder %s24, 1
      %p136 = por %p134, %p135
      %p138 = scmp.ne.s32.totalorder %s121, %s137
      %p139 = scmp.eq.s32.totalorder %s24, 0
      %p140 = por %p138, %p139
      %p141 = scmp.le.s32.totalorder 1, %s18
      %p142 = scmp.lt.s32.totalorder %s18, 3
      %p143 = pnand %p141, %p142
      %p144 = pneg %p143
      // Predicated region
      $region9: #{tpu_custom_call.1} parent=5 // pred_check
        _
      $region10: #{tpu_custom_call.1} parent=5 // pred_check_branch
        %146 = sbr.rel (%p143) target = $region12
      $region11: #{tpu_custom_call.1} parent=5 // pred_region
        %s147 = ssub.s32 %s18, 1
        // Predicated region
        $region13: #{tpu_custom_call.1} parent=11 // pred_check
          %p148 = pneg %p65
        $region14: #{tpu_custom_call.1} parent=11 // pred_check_branch
          %150 = sbr.rel (%p148) target = $region16
        $region15: #{tpu_custom_call.1} parent=11 // pred_region
          %s152 = ssub.s32 128, 128
          %153 = vsyncadd [#allocation6], %s152
          %s155 = sshll.u32 [#allocation5], 4
          %s156 = int_to_ptr.vmem [resolvable:$true] %s155
          %158 = dma.hbm_to_vmem [thread:$0]  %s1, 128, %s156, [#allocation6]
        $region16: #{tpu_custom_call.1} parent=11 // pred_fallthru
          _
        // Predicated region
        $region17: #{tpu_custom_call.1} parent=11 // pred_check
          %p159 = pneg %p86
        $region18: #{tpu_custom_call.1} parent=11 // pred_check_branch
          %161 = sbr.rel (%p159) target = $region20
        $region19: #{tpu_custom_call.1} parent=11 // pred_region
          %s163 = ssub.s32 16, 16
          %164 = vsyncadd [#allocation6], %s163
          %s166 = sshll.u32 [#allocation7], 4
          %s167 = int_to_ptr.vmem [resolvable:$true] %s166
          %169 = dma.hbm_to_vmem [thread:$0]  %s2, 16, %s167, [#allocation6]
        $region20: #{tpu_custom_call.1} parent=11 // pred_fallthru
          _
        // Predicated region
        $region21: #{tpu_custom_call.1} parent=11 // pred_check
          %p170 = pneg %p107
        $region22: #{tpu_custom_call.1} parent=11 // pred_check_branch
          %172 = sbr.rel (%p170) target = $region24
        $region23: #{tpu_custom_call.1} parent=11 // pred_region
          %s174 = ssub.s32 16, 16
          %175 = vsyncadd [#allocation9], %s174
          %s177 = sshll.u32 [#allocation8], 4
          %s178 = int_to_ptr.vmem [resolvable:$true] %s177
          %180 = dma.hbm_to_vmem [thread:$0]  %s3, 16, %s178, [#allocation9]
        $region24: #{tpu_custom_call.1} parent=11 // pred_fallthru
          _
      $region12: #{tpu_custom_call.1} parent=5 // pred_fallthru
        _
      %p181 = scmp.lt.s32.totalorder %s18, 2
      // Predicated region
      $region25: #{tpu_custom_call.1} parent=5 // pred_check
        %p182 = pneg %p181
      $region26: #{tpu_custom_call.1} parent=5 // pred_check_branch
        %184 = sbr.rel (%p182) target = $region28
      $region27: #{tpu_custom_call.1} parent=5 // pred_region
        // Predicated region
        $region29: #{tpu_custom_call.1} parent=27 // pred_check
          %p185 = pneg %p38
        $region30: #{tpu_custom_call.1} parent=27 // pred_check_branch
          %187 = sbr.rel (%p185) target = $region32
        $region31: #{tpu_custom_call.1} parent=27 // pred_region
          %s188 = sand.u32 %s28, 1
          %s189 = scalar_lea.sflag [#allocation3], %s188
          %s190 = sand.u32 %s28, 1
          %s191 = smul.addr %s190, 256
          %s192 = scalar_lea.vmem [#allocation2], %s191
          %s193 = smul.u32 32, %s18
          %s195 = ssub.s32 4096, 4096
          %196 = vsyncadd %s189, %s195
          %s197 = smul.addr %s193, 128
          %s198 = scalar_lea.hbm %s0, %s197
          %s199 = sshll.u32 %s192, 4
          %s200 = int_to_ptr.vmem [resolvable:$true] %s199
          %205 = dma.hbm_to_vmem [thread:$0]  %s198, 4096, %s200, %s189, 128, 128, 8
        $region32: #{tpu_custom_call.1} parent=27 // pred_fallthru
          _
      $region28: #{tpu_custom_call.1} parent=5 // pred_fallthru
        _
      %p206 = scmp.le.s32.totalorder 1, %s18
      %p207 = scmp.lt.s32.totalorder %s18, 3
      %p208 = pnand %p206, %p207
      %p209 = pneg %p208
      // Predicated region
      $region33: #{tpu_custom_call.1} parent=5 // pred_check
        _
      $region34: #{tpu_custom_call.1} parent=5 // pred_check_branch
        %211 = sbr.rel (%p208) target = $region36
      $region35: #{tpu_custom_call.1} parent=5 // pred_region
        %s212 = ssub.s32 %s18, 1
        %s213 = sand.u32 %s31, 1
        %s214 = scalar_lea.sflag [#allocation3], %s213
        %s215 = sand.u32 %s31, 1
        %s216 = smul.addr %s215, 256
        %s217 = scalar_lea.vmem [#allocation2], %s216
        // Predicated region
        $region37: #{tpu_custom_call.1} parent=35 // pred_check
          %p218 = pneg %p44
        $region38: #{tpu_custom_call.1} parent=35 // pred_check_branch
          %220 = sbr.rel (%p218) target = $region40
        $region39: #{tpu_custom_call.1} parent=35 // pred_region
          %221 = dma.done %s214, 4096
        $region40: #{tpu_custom_call.1} parent=35 // pred_fallthru
          _
        // Predicated region
        $region41: #{tpu_custom_call.1} parent=35 // pred_check
          %p222 = pneg %p65
        $region42: #{tpu_custom_call.1} parent=35 // pred_check_branch
          %224 = sbr.rel (%p222) target = $region44
        $region43: #{tpu_custom_call.1} parent=35 // pred_region
          %225 = dma.done [#allocation6], 128
        $region44: #{tpu_custom_call.1} parent=35 // pred_fallthru
          _
        // Predicated region
        $region45: #{tpu_custom_call.1} parent=35 // pred_check
          %p226 = pneg %p86
        $region46: #{tpu_custom_call.1} parent=35 // pred_check_branch
          %228 = sbr.rel (%p226) target = $region48
        $region47: #{tpu_custom_call.1} parent=35 // pred_region
          %229 = dma.done [#allocation6], 16
        $region48: #{tpu_custom_call.1} parent=35 // pred_fallthru
          _
        // Predicated region
        $region49: #{tpu_custom_call.1} parent=35 // pred_check
          %p230 = pneg %p107
        $region50: #{tpu_custom_call.1} parent=35 // pred_check_branch
          %232 = sbr.rel (%p230) target = $region52
        $region51: #{tpu_custom_call.1} parent=35 // pred_region
          %233 = dma.done [#allocation9], 16
        $region52: #{tpu_custom_call.1} parent=35 // pred_fallthru
          _
        %s234 = sand.u32 %s31, 1
        %s235 = scalar_lea.sflag [#allocation3], %s234
        %s236 = sand.u32 %s31, 1
        %s237 = smul.addr %s236, 256
        %s238 = scalar_lea.vmem [#allocation2], %s237
        %p239 = pneg %p44
        %p240 = pneg %p41
        %p241 = pneg %p65
        %p242 = pneg %p62
        %p243 = pneg %p86
        %p244 = pneg %p83
        %p245 = pneg %p107
        %p246 = pneg %p104
        %p247 = pneg %p133
        %p248 = pneg %p130
        %s249 = sand.u32 %s120, 1
        %s250 = scalar_lea.sflag [#allocation4], %s249
        %s251 = sand.u32 %s120, 1
        %s252 = smul.addr %s251, 256
        %s253 = scalar_lea.vmem [#allocation10], %s252
        %s254 = smul.u32 32, %s23
        %s255 = smul.u32 32, %s23
        %v256 = vld [vmem:[%s217] sm:$0xff]
        %v257 = vld [vmem:[%s217 + $0x8] sm:$0xff]
        %v258 = vld [vmem:[%s217 + $0x10] sm:$0xff]
        %v259 = vld [vmem:[%s217 + $0x18] sm:$0xff]
        %v260 = vld [vmem:[%s217 + $0x20] sm:$0xff]
        %v261 = vld [vmem:[%s217 + $0x28] sm:$0xff]
        %v262 = vld [vmem:[%s217 + $0x30] sm:$0xff]
        %v263 = vld [vmem:[%s217 + $0x38] sm:$0xff]
        %v264 = vld [vmem:[%s217 + $0x40] sm:$0xff]
        %v265 = vld [vmem:[%s217 + $0x48] sm:$0xff]
        %v266 = vld [vmem:[%s217 + $0x50] sm:$0xff]
        %v267 = vld [vmem:[%s217 + $0x58] sm:$0xff]
        %v268 = vld [vmem:[%s217 + $0x60] sm:$0xff]
        %v269 = vld [vmem:[%s217 + $0x68] sm:$0xff]
        %v270 = vld [vmem:[%s217 + $0x70] sm:$0xff]
        %v271 = vld [vmem:[%s217 + $0x78] sm:$0xff]
        %v272 = vld [vmem:[%s217 + $0x80] sm:$0xff]
        %v273 = vld [vmem:[%s217 + $0x88] sm:$0xff]
        %v274 = vld [vmem:[%s217 + $0x90] sm:$0xff]
        %v275 = vld [vmem:[%s217 + $0x98] sm:$0xff]
        %v276 = vld [vmem:[%s217 + $0xa0] sm:$0xff]
        %v277 = vld [vmem:[%s217 + $0xa8] sm:$0xff]
        %v278 = vld [vmem:[%s217 + $0xb0] sm:$0xff]
        %v279 = vld [vmem:[%s217 + $0xb8] sm:$0xff]
        %v280 = vld [vmem:[%s217 + $0xc0] sm:$0xff]
        %v281 = vld [vmem:[%s217 + $0xc8] sm:$0xff]
        %v282 = vld [vmem:[%s217 + $0xd0] sm:$0xff]
        %v283 = vld [vmem:[%s217 + $0xd8] sm:$0xff]
        %v284 = vld [vmem:[%s217 + $0xe0] sm:$0xff]
        %v285 = vld [vmem:[%s217 + $0xe8] sm:$0xff]
        %v286 = vld [vmem:[%s217 + $0xf0] sm:$0xff]
        %v287 = vld [vmem:[%s217 + $0xf8] sm:$0xff]
        %v288 = vld [vmem:[#allocation5] sm:$0xff]
        %vm289 = vcmask 64512
        %v291 = vsel %vm289, %v256, 0
        %v294 = vsel %vm289, %v257, 0
        %v297 = vsel %vm289, %v258, 0
        %v300 = vsel %vm289, %v259, 0
        %v303 = vsel %vm289, %v260, 0
        %v306 = vsel %vm289, %v261, 0
        %v309 = vsel %vm289, %v262, 0
        %v312 = vsel %vm289, %v263, 0
        %v315 = vsel %vm289, %v264, 0
        %v318 = vsel %vm289, %v265, 0
        %v321 = vsel %vm289, %v266, 0
        %v324 = vsel %vm289, %v267, 0
        %v327 = vsel %vm289, %v268, 0
        %v330 = vsel %vm289, %v269, 0
        %v333 = vsel %vm289, %v270, 0
        %v336 = vsel %vm289, %v271, 0
        %v339 = vsel %vm289, %v272, 0
        %v342 = vsel %vm289, %v273, 0
        %v345 = vsel %vm289, %v274, 0
        %v348 = vsel %vm289, %v275, 0
        %v351 = vsel %vm289, %v276, 0
        %v354 = vsel %vm289, %v277, 0
        %v357 = vsel %vm289, %v278, 0
        %v360 = vsel %vm289, %v279, 0
        %v363 = vsel %vm289, %v280, 0
        %v366 = vsel %vm289, %v281, 0
        %v369 = vsel %vm289, %v282, 0
        %v372 = vsel %vm289, %v283, 0
        %v375 = vsel %vm289, %v284, 0
        %v378 = vsel %vm289, %v285, 0
        %v381 = vsel %vm289, %v286, 0
        %v384 = vsel %vm289, %v287, 0
        %386 = vmatprep.subr.mxu0 0.0
        %387 = vmatpush1.msra.mxu0 %v288
        %388 = vmatprep.subr.mxu0 0.0
        %389 = vmatpush1.msra.mxu0 0.0
        %390 = vmatprep.subr.mxu0 0.0
        %391 = vmatpush1.msra.mxu0 0.0
        %392 = vmatprep.subr.mxu0 0.0
        %393 = vmatpush1.msra.mxu0 0.0
        %394 = vmatprep.subr.mxu0 0.0
        %395 = vmatpush1.msra.mxu0 0.0
        %396 = vmatprep.subr.mxu0 0.0
        %397 = vmatpush1.msra.mxu0 0.0
        %398 = vmatprep.subr.mxu0 0.0
        %399 = vmatpush1.msra.mxu0 0.0
        %400 = vmatprep.subr.mxu0 0.0
        %401 = vmatpush1.msra.mxu0 0.0
        %402 = vmatprep.subr.mxu0 0.0
        %403 = vmatpush1.msra.mxu0 0.0
        %404 = vmatprep.subr.mxu0 0.0
        %405 = vmatpush1.msra.mxu0 0.0
        %406 = vmatprep.subr.mxu0 0.0
        %407 = vmatpush1.msra.mxu0 0.0
        %408 = vmatprep.subr.mxu0 0.0
        %409 = vmatpush1.msra.mxu0 0.0
        %410 = vmatprep.subr.mxu0 0.0
        %411 = vmatpush1.msra.mxu0 0.0
        %412 = vmatprep.subr.mxu0 0.0
        %413 = vmatpush1.msra.mxu0 0.0
        %414 = vmatprep.subr.mxu0 0.0
        %415 = vmatpush1.msra.mxu0 0.0
        %416 = vmatprep.subr.mxu0 0.0
        %417 = vmatpush1.msra.mxu0 0.0
        %418 = vmatprep.subr.mxu0 0.0
        %419 = vmatpush1.msra.mxu0 0.0
        %420 = vmatprep.subr.mxu0 0.0
        %421 = vmatpush1.msra.mxu0 0.0
        %422 = vmatprep.subr.mxu0 0.0
        %423 = vmatpush1.msra.mxu0 0.0
        %424 = vmatprep.subr.mxu0 0.0
        %425 = vmatpush1.msra.mxu0 0.0
        %426 = vmatprep.subr.mxu0 0.0
        %427 = vmatpush1.msra.mxu0 0.0
        %428 = vmatprep.subr.mxu0 0.0
        %429 = vmatpush1.msra.mxu0 0.0
        %430 = vmatprep.subr.mxu0 0.0
        %431 = vmatpush1.msra.mxu0 0.0
        %432 = vmatprep.subr.mxu0 0.0
        %433 = vmatpush1.msra.mxu0 0.0
        %434 = vmatprep.subr.mxu0 0.0
        %435 = vmatpush1.msra.mxu0 0.0
        %436 = vmatprep.subr.mxu0 0.0
        %437 = vmatpush1.msra.mxu0 0.0
        %438 = vmatprep.subr.mxu0 0.0
        %439 = vmatpush1.msra.mxu0 0.0
        %440 = vmatprep.subr.mxu0 0.0
        %441 = vmatpush1.msra.mxu0 0.0
        %442 = vmatprep.subr.mxu0 0.0
        %443 = vmatpush1.msra.mxu0 0.0
        %444 = vmatprep.subr.mxu0 0.0
        %445 = vmatpush1.msra.mxu0 0.0
        %446 = vmatprep.subr.mxu0 0.0
        %447 = vmatpush1.msra.mxu0 0.0
        %448 = vmatprep.subr.mxu0 0.0
        %449 = vmatpush1.msra.mxu0 0.0
        %450 = vmatprep.mubr.f32.mxu0 0.0
        %451 = vmatmul.mubr.f32.gmra.mrb[0].mxu0 %v291
        %v452 = vpop.f32.mrb[0].mxu0
        %v453 = vadd.f32 0.0, %v452
        %v454 = vpop.f32.mrb[0].mxu0
        %455 = vmatprep.mubr.f32.mxu0 0.0
        %456 = vmatmul.mubr.f32.gmra.mrb[0].mxu0 %v294
        %v457 = vpop.f32.mrb[0].mxu0
        %v458 = vadd.f32 0.0, %v457
        %v459 = vpop.f32.mrb[0].mxu0
        %460 = vmatprep.mubr.f32.mxu0 0.0
        %461 = vmatmul.mubr.f32.gmra.mrb[0].mxu0 %v297
        %v462 = vpop.f32.mrb[0].mxu0
        %v463 = vadd.f32 0.0, %v462
        %v464 = vpop.f32.mrb[0].mxu0
        %465 = vmatprep.mubr.f32.mxu0 0.0
        %466 = vmatmul.mubr.f32.gmra.mrb[0].mxu0 %v300
        %v467 = vpop.f32.mrb[0].mxu0
        %v468 = vadd.f32 0.0, %v467
        %v469 = vpop.f32.mrb[0].mxu0
        %470 = vmatprep.mubr.f32.mxu0 0.0
        %471 = vmatmul.mubr.f32.gmra.mrb[0].mxu0 %v303
        %v472 = vpop.f32.mrb[0].mxu0
        %v473 = vadd.f32 0.0, %v472
        %v474 = vpop.f32.mrb[0].mxu0
        %475 = vmatprep.mubr.f32.mxu0 0.0
        %476 = vmatmul.mubr.f32.gmra.mrb[0].mxu0 %v306
        %v477 = vpop.f32.mrb[0].mxu0
        %v478 = vadd.f32 0.0, %v477
        %v479 = vpop.f32.mrb[0].mxu0
        %480 = vmatprep.mubr.f32.mxu0 0.0
        %481 = vmatmul.mubr.f32.gmra.mrb[0].mxu0 %v309
        %v482 = vpop.f32.mrb[0].mxu0
        %v483 = vadd.f32 0.0, %v482
        %v484 = vpop.f32.mrb[0].mxu0
        %485 = vmatprep.mubr.f32.mxu0 0.0
        %486 = vmatmul.mubr.f32.gmra.mrb[0].mxu0 %v312
        %v487 = vpop.f32.mrb[0].mxu0
        %v488 = vadd.f32 0.0, %v487
        %v489 = vpop.f32.mrb[0].mxu0
        %490 = vmatprep.mubr.f32.mxu0 0.0
        %491 = vmatmul.mubr.f32.gmra.mrb[0].mxu0 %v315
        %v492 = vpop.f32.mrb[0].mxu0
        %v493 = vadd.f32 0.0, %v492
        %v494 = vpop.f32.mrb[0].mxu0
        %495 = vmatprep.mubr.f32.mxu0 0.0
        %496 = vmatmul.mubr.f32.gmra.mrb[0].mxu0 %v318
        %v497 = vpop.f32.mrb[0].mxu0
        %v498 = vadd.f32 0.0, %v497
        %v499 = vpop.f32.mrb[0].mxu0
        %500 = vmatprep.mubr.f32.mxu0 0.0
        %501 = vmatmul.mubr.f32.gmra.mrb[0].mxu0 %v321
        %v502 = vpop.f32.mrb[0].mxu0
        %v503 = vadd.f32 0.0, %v502
        %v504 = vpop.f32.mrb[0].mxu0
        %505 = vmatprep.mubr.f32.mxu0 0.0
        %506 = vmatmul.mubr.f32.gmra.mrb[0].mxu0 %v324
        %v507 = vpop.f32.mrb[0].mxu0
        %v508 = vadd.f32 0.0, %v507
        %v509 = vpop.f32.mrb[0].mxu0
        %510 = vmatprep.mubr.f32.mxu0 0.0
        %511 = vmatmul.mubr.f32.gmra.mrb[0].mxu0 %v327
        %v512 = vpop.f32.mrb[0].mxu0
        %v513 = vadd.f32 0.0, %v512
        %v514 = vpop.f32.mrb[0].mxu0
        %515 = vmatprep.mubr.f32.mxu0 0.0
        %516 = vmatmul.mubr.f32.gmra.mrb[0].mxu0 %v330
        %v517 = vpop.f32.mrb[0].mxu0
        %v518 = vadd.f32 0.0, %v517
        %v519 = vpop.f32.mrb[0].mxu0
        %520 = vmatprep.mubr.f32.mxu0 0.0
        %521 = vmatmul.mubr.f32.gmra.mrb[0].mxu0 %v333
        %v522 = vpop.f32.mrb[0].mxu0
        %v523 = vadd.f32 0.0, %v522
        %v524 = vpop.f32.mrb[0].mxu0
        %525 = vmatprep.mubr.f32.mxu0 0.0
        %526 = vmatmul.mubr.f32.gmra.mrb[0].mxu0 %v336
        %v527 = vpop.f32.mrb[0].mxu0
        %v528 = vadd.f32 0.0, %v527
        %v529 = vpop.f32.mrb[0].mxu0
        %530 = vmatprep.mubr.f32.mxu0 0.0
        %531 = vmatmul.mubr.f32.gmra.mrb[0].mxu0 %v339
        %v532 = vpop.f32.mrb[0].mxu0
        %v533 = vadd.f32 0.0, %v532
        %v534 = vpop.f32.mrb[0].mxu0
        %535 = vmatprep.mubr.f32.mxu0 0.0
        %536 = vmatmul.mubr.f32.gmra.mrb[0].mxu0 %v342
        %v537 = vpop.f32.mrb[0].mxu0
        %v538 = vadd.f32 0.0, %v537
        %v539 = vpop.f32.mrb[0].mxu0
        %540 = vmatprep.mubr.f32.mxu0 0.0
        %541 = vmatmul.mubr.f32.gmra.mrb[0].mxu0 %v345
        %v542 = vpop.f32.mrb[0].mxu0
        %v543 = vadd.f32 0.0, %v542
        %v544 = vpop.f32.mrb[0].mxu0
        %545 = vmatprep.mubr.f32.mxu0 0.0
        %546 = vmatmul.mubr.f32.gmra.mrb[0].mxu0 %v348
        %v547 = vpop.f32.mrb[0].mxu0
        %v548 = vadd.f32 0.0, %v547
        %v549 = vpop.f32.mrb[0].mxu0
        %550 = vmatprep.mubr.f32.mxu0 0.0
        %551 = vmatmul.mubr.f32.gmra.mrb[0].mxu0 %v351
        %v552 = vpop.f32.mrb[0].mxu0
        %v553 = vadd.f32 0.0, %v552
        %v554 = vpop.f32.mrb[0].mxu0
        %555 = vmatprep.mubr.f32.mxu0 0.0
        %556 = vmatmul.mubr.f32.gmra.mrb[0].mxu0 %v354
        %v557 = vpop.f32.mrb[0].mxu0
        %v558 = vadd.f32 0.0, %v557
        %v559 = vpop.f32.mrb[0].mxu0
        %560 = vmatprep.mubr.f32.mxu0 0.0
        %561 = vmatmul.mubr.f32.gmra.mrb[0].mxu0 %v357
        %v562 = vpop.f32.mrb[0].mxu0
        %v563 = vadd.f32 0.0, %v562
        %v564 = vpop.f32.mrb[0].mxu0
        %565 = vmatprep.mubr.f32.mxu0 0.0
        %566 = vmatmul.mubr.f32.gmra.mrb[0].mxu0 %v360
        %v567 = vpop.f32.mrb[0].mxu0
        %v568 = vadd.f32 0.0, %v567
        %v569 = vpop.f32.mrb[0].mxu0
        %570 = vmatprep.mubr.f32.mxu0 0.0
        %571 = vmatmul.mubr.f32.gmra.mrb[0].mxu0 %v363
        %v572 = vpop.f32.mrb[0].mxu0
        %v573 = vadd.f32 0.0, %v572
        %v574 = vpop.f32.mrb[0].mxu0
        %575 = vmatprep.mubr.f32.mxu0 0.0
        %576 = vmatmul.mubr.f32.gmra.mrb[0].mxu0 %v366
        %v577 = vpop.f32.mrb[0].mxu0
        %v578 = vadd.f32 0.0, %v577
        %v579 = vpop.f32.mrb[0].mxu0
        %580 = vmatprep.mubr.f32.mxu0 0.0
        %581 = vmatmul.mubr.f32.gmra.mrb[0].mxu0 %v369
        %v582 = vpop.f32.mrb[0].mxu0
        %v583 = vadd.f32 0.0, %v582
        %v584 = vpop.f32.mrb[0].mxu0
        %585 = vmatprep.mubr.f32.mxu0 0.0
        %586 = vmatmul.mubr.f32.gmra.mrb[0].mxu0 %v372
        %v587 = vpop.f32.mrb[0].mxu0
        %v588 = vadd.f32 0.0, %v587
        %v589 = vpop.f32.mrb[0].mxu0
        %590 = vmatprep.mubr.f32.mxu0 0.0
        %591 = vmatmul.mubr.f32.gmra.mrb[0].mxu0 %v375
        %v592 = vpop.f32.mrb[0].mxu0
        %v593 = vadd.f32 0.0, %v592
        %v594 = vpop.f32.mrb[0].mxu0
        %595 = vmatprep.mubr.f32.mxu0 0.0
        %596 = vmatmul.mubr.f32.gmra.mrb[0].mxu0 %v378
        %v597 = vpop.f32.mrb[0].mxu0
        %v598 = vadd.f32 0.0, %v597
        %v599 = vpop.f32.mrb[0].mxu0
        %600 = vmatprep.mubr.f32.mxu0 0.0
        %601 = vmatmul.mubr.f32.gmra.mrb[0].mxu0 %v381
        %v602 = vpop.f32.mrb[0].mxu0
        %v603 = vadd.f32 0.0, %v602
        %v604 = vpop.f32.mrb[0].mxu0
        %605 = vmatprep.mubr.f32.mxu0 0.0
        %606 = vmatmul.mubr.f32.gmra.mrb[0].mxu0 %v384
        %v607 = vpop.f32.mrb[0].mxu0
        %v608 = vadd.f32 0.0, %v607
        %v609 = vpop.f32.mrb[0].mxu0
        %610 = vdwg.mxu0
        %v611 = vld [vmem:[#allocation7] sm:$0x1]
        %v613 = vlaneseq
        %v614 = vshrl.u32 %v613, 7
        %v615 = vsub.s32 0, %v614
        %v616 = vrot.slane %v611, %v615
        %v618 = vmul.f32 %v453, %v616
        %v619 = vmul.f32 %v458, %v616
        %v620 = vmul.f32 %v463, %v616
        %v621 = vmul.f32 %v468, %v616
        %v622 = vmul.f32 %v473, %v616
        %v623 = vmul.f32 %v478, %v616
        %v624 = vmul.f32 %v483, %v616
        %v625 = vmul.f32 %v488, %v616
        %v626 = vmul.f32 %v493, %v616
        %v627 = vmul.f32 %v498, %v616
        %v628 = vmul.f32 %v503, %v616
        %v629 = vmul.f32 %v508, %v616
        %v630 = vmul.f32 %v513, %v616
        %v631 = vmul.f32 %v518, %v616
        %v632 = vmul.f32 %v523, %v616
        %v633 = vmul.f32 %v528, %v616
        %v634 = vmul.f32 %v533, %v616
        %v635 = vmul.f32 %v538, %v616
        %v636 = vmul.f32 %v543, %v616
        %v637 = vmul.f32 %v548, %v616
        %v638 = vmul.f32 %v553, %v616
        %v639 = vmul.f32 %v558, %v616
        %v640 = vmul.f32 %v563, %v616
        %v641 = vmul.f32 %v568, %v616
        %v642 = vmul.f32 %v573, %v616
        %v643 = vmul.f32 %v578, %v616
        %v644 = vmul.f32 %v583, %v616
        %v645 = vmul.f32 %v588, %v616
        %v646 = vmul.f32 %v593, %v616
        %v647 = vmul.f32 %v598, %v616
        %v648 = vmul.f32 %v603, %v616
        %v649 = vmul.f32 %v608, %v616
        %v650 = vld [vmem:[#allocation8] sm:$0x1]
        %v652 = vlaneseq
        %v653 = vshrl.u32 %v652, 7
        %v654 = vsub.s32 0, %v653
        %v655 = vrot.slane %v650, %v654
        %v657 = vadd.f32 %v618, %v655
        %v658 = vadd.f32 %v619, %v655
        %v659 = vadd.f32 %v620, %v655
        %v660 = vadd.f32 %v621, %v655
        %v661 = vadd.f32 %v622, %v655
        %v662 = vadd.f32 %v623, %v655
        %v663 = vadd.f32 %v624, %v655
        %v664 = vadd.f32 %v625, %v655
        %v665 = vadd.f32 %v626, %v655
        %v666 = vadd.f32 %v627, %v655
        %v667 = vadd.f32 %v628, %v655
        %v668 = vadd.f32 %v629, %v655
        %v669 = vadd.f32 %v630, %v655
        %v670 = vadd.f32 %v631, %v655
        %v671 = vadd.f32 %v632, %v655
        %v672 = vadd.f32 %v633, %v655
        %v673 = vadd.f32 %v634, %v655
        %v674 = vadd.f32 %v635, %v655
        %v675 = vadd.f32 %v636, %v655
        %v676 = vadd.f32 %v637, %v655
        %v677 = vadd.f32 %v638, %v655
        %v678 = vadd.f32 %v639, %v655
        %v679 = vadd.f32 %v640, %v655
        %v680 = vadd.f32 %v641, %v655
        %v681 = vadd.f32 %v642, %v655
        %v682 = vadd.f32 %v643, %v655
        %v683 = vadd.f32 %v644, %v655
        %v684 = vadd.f32 %v645, %v655
        %v685 = vadd.f32 %v646, %v655
        %v686 = vadd.f32 %v647, %v655
        %v687 = vadd.f32 %v648, %v655
        %v688 = vadd.f32 %v649, %v655
        %v689 = vxor.u32 %v657, 2147483648
        %v690 = vxor.u32 %v658, 2147483648
        %v691 = vxor.u32 %v659, 2147483648
        %v692 = vxor.u32 %v660, 2147483648
        %v693 = vxor.u32 %v661, 2147483648
        %v694 = vxor.u32 %v662, 2147483648
        %v695 = vxor.u32 %v663, 2147483648
        %v696 = vxor.u32 %v664, 2147483648
        %v697 = vxor.u32 %v665, 2147483648
        %v698 = vxor.u32 %v666, 2147483648
        %v699 = vxor.u32 %v667, 2147483648
        %v700 = vxor.u32 %v668, 2147483648
        %v701 = vxor.u32 %v669, 2147483648
        %v702 = vxor.u32 %v670, 2147483648
        %v703 = vxor.u32 %v671, 2147483648
        %v704 = vxor.u32 %v672, 2147483648
        %v705 = vxor.u32 %v673, 2147483648
        %v706 = vxor.u32 %v674, 2147483648
        %v707 = vxor.u32 %v675, 2147483648
        %v708 = vxor.u32 %v676, 2147483648
        %v709 = vxor.u32 %v677, 2147483648
        %v710 = vxor.u32 %v678, 2147483648
        %v711 = vxor.u32 %v679, 2147483648
        %v712 = vxor.u32 %v680, 2147483648
        %v713 = vxor.u32 %v681, 2147483648
        %v714 = vxor.u32 %v682, 2147483648
        %v715 = vxor.u32 %v683, 2147483648
        %v716 = vxor.u32 %v684, 2147483648
        %v717 = vxor.u32 %v685, 2147483648
        %v718 = vxor.u32 %v686, 2147483648
        %v719 = vxor.u32 %v687, 2147483648
        %v720 = vxor.u32 %v688, 2147483648
        %v721 = vmul.f32 %v689, 1.442695
        %v722 = vpow.pop %v721
        %v723 = vmul.f32 %v690, 1.442695
        %v724 = vpow.pop %v723
        %v725 = vmul.f32 %v691, 1.442695
        %v726 = vpow.pop %v725
        %v727 = vmul.f32 %v692, 1.442695
        %v728 = vpow.pop %v727
        %v729 = vmul.f32 %v693, 1.442695
        %v730 = vpow.pop %v729
        %v731 = vmul.f32 %v694, 1.442695
        %v732 = vpow.pop %v731
        %v733 = vmul.f32 %v695, 1.442695
        %v734 = vpow.pop %v733
        %v735 = vmul.f32 %v696, 1.442695
        %v736 = vpow.pop %v735
        %v737 = vmul.f32 %v697, 1.442695
        %v738 = vpow.pop %v737
        %v739 = vmul.f32 %v698, 1.442695
        %v740 = vpow.pop %v739
        %v741 = vmul.f32 %v699, 1.442695
        %v742 = vpow.pop %v741
        %v743 = vmul.f32 %v700, 1.442695
        %v744 = vpow.pop %v743
        %v745 = vmul.f32 %v701, 1.442695
        %v746 = vpow.pop %v745
        %v747 = vmul.f32 %v702, 1.442695
        %v748 = vpow.pop %v747
        %v749 = vmul.f32 %v703, 1.442695
        %v750 = vpow.pop %v749
        %v751 = vmul.f32 %v704, 1.442695
        %v752 = vpow.pop %v751
        %v753 = vmul.f32 %v705, 1.442695
        %v754 = vpow.pop %v753
        %v755 = vmul.f32 %v706, 1.442695
        %v756 = vpow.pop %v755
        %v757 = vmul.f32 %v707, 1.442695
        %v758 = vpow.pop %v757
        %v759 = vmul.f32 %v708, 1.442695
        %v760 = vpow.pop %v759
        %v761 = vmul.f32 %v709, 1.442695
        %v762 = vpow.pop %v761
        %v763 = vmul.f32 %v710, 1.442695
        %v764 = vpow.pop %v763
        %v765 = vmul.f32 %v711, 1.442695
        %v766 = vpow.pop %v765
        %v767 = vmul.f32 %v712, 1.442695
        %v768 = vpow.pop %v767
        %v769 = vmul.f32 %v713, 1.442695
        %v770 = vpow.pop %v769
        %v771 = vmul.f32 %v714, 1.442695
        %v772 = vpow.pop %v771
        %v773 = vmul.f32 %v715, 1.442695
        %v774 = vpow.pop %v773
        %v775 = vmul.f32 %v716, 1.442695
        %v776 = vpow.pop %v775
        %v777 = vmul.f32 %v717, 1.442695
        %v778 = vpow.pop %v777
        %v779 = vmul.f32 %v718, 1.442695
        %v780 = vpow.pop %v779
        %v781 = vmul.f32 %v719, 1.442695
        %v782 = vpow.pop %v781
        %v783 = vmul.f32 %v720, 1.442695
        %v784 = vpow.pop %v783
        %v785 = vadd.f32 %v722, 1.0
        %v786 = vadd.f32 %v724, 1.0
        %v787 = vadd.f32 %v726, 1.0
        %v788 = vadd.f32 %v728, 1.0
        %v789 = vadd.f32 %v730, 1.0
        %v790 = vadd.f32 %v732, 1.0
        %v791 = vadd.f32 %v734, 1.0
        %v792 = vadd.f32 %v736, 1.0
        %v793 = vadd.f32 %v738, 1.0
        %v794 = vadd.f32 %v740, 1.0
        %v795 = vadd.f32 %v742, 1.0
        %v796 = vadd.f32 %v744, 1.0
        %v797 = vadd.f32 %v746, 1.0
        %v798 = vadd.f32 %v748, 1.0
        %v799 = vadd.f32 %v750, 1.0
        %v800 = vadd.f32 %v752, 1.0
        %v801 = vadd.f32 %v754, 1.0
        %v802 = vadd.f32 %v756, 1.0
        %v803 = vadd.f32 %v758, 1.0
        %v804 = vadd.f32 %v760, 1.0
        %v805 = vadd.f32 %v762, 1.0
        %v806 = vadd.f32 %v764, 1.0
        %v807 = vadd.f32 %v766, 1.0
        %v808 = vadd.f32 %v768, 1.0
        %v809 = vadd.f32 %v770, 1.0
        %v810 = vadd.f32 %v772, 1.0
        %v811 = vadd.f32 %v774, 1.0
        %v812 = vadd.f32 %v776, 1.0
        %v813 = vadd.f32 %v778, 1.0
        %v814 = vadd.f32 %v780, 1.0
        %v815 = vadd.f32 %v782, 1.0
        %v816 = vadd.f32 %v784, 1.0
        %v817 = vrcp.pop %v785
        %v818 = vmul.f32 1.0, %v817
        %v819 = vrcp.pop %v786
        %v820 = vmul.f32 1.0, %v819
        %v821 = vrcp.pop %v787
        %v822 = vmul.f32 1.0, %v821
        %v823 = vrcp.pop %v788
        %v824 = vmul.f32 1.0, %v823
        %v825 = vrcp.pop %v789
        %v826 = vmul.f32 1.0, %v825
        %v827 = vrcp.pop %v790
        %v828 = vmul.f32 1.0, %v827
        %v829 = vrcp.pop %v791
        %v830 = vmul.f32 1.0, %v829
        %v831 = vrcp.pop %v792
        %v832 = vmul.f32 1.0, %v831
        %v833 = vrcp.pop %v793
        %v834 = vmul.f32 1.0, %v833
        %v835 = vrcp.pop %v794
        %v836 = vmul.f32 1.0, %v835
        %v837 = vrcp.pop %v795
        %v838 = vmul.f32 1.0, %v837
        %v839 = vrcp.pop %v796
        %v840 = vmul.f32 1.0, %v839
        %v841 = vrcp.pop %v797
        %v842 = vmul.f32 1.0, %v841
        %v843 = vrcp.pop %v798
        %v844 = vmul.f32 1.0, %v843
        %v845 = vrcp.pop %v799
        %v846 = vmul.f32 1.0, %v845
        %v847 = vrcp.pop %v800
        %v848 = vmul.f32 1.0, %v847
        %v849 = vrcp.pop %v801
        %v850 = vmul.f32 1.0, %v849
        %v851 = vrcp.pop %v802
        %v852 = vmul.f32 1.0, %v851
        %v853 = vrcp.pop %v803
        %v854 = vmul.f32 1.0, %v853
        %v855 = vrcp.pop %v804
        %v856 = vmul.f32 1.0, %v855
        %v857 = vrcp.pop %v805
        %v858 = vmul.f32 1.0, %v857
        %v859 = vrcp.pop %v806
        %v860 = vmul.f32 1.0, %v859
        %v861 = vrcp.pop %v807
        %v862 = vmul.f32 1.0, %v861
        %v863 = vrcp.pop %v808
        %v864 = vmul.f32 1.0, %v863
        %v865 = vrcp.pop %v809
        %v866 = vmul.f32 1.0, %v865
        %v867 = vrcp.pop %v810
        %v868 = vmul.f32 1.0, %v867
        %v869 = vrcp.pop %v811
        %v870 = vmul.f32 1.0, %v869
        %v871 = vrcp.pop %v812
        %v872 = vmul.f32 1.0, %v871
        %v873 = vrcp.pop %v813
        %v874 = vmul.f32 1.0, %v873
        %v875 = vrcp.pop %v814
        %v876 = vmul.f32 1.0, %v875
        %v877 = vrcp.pop %v815
        %v878 = vmul.f32 1.0, %v877
        %v879 = vrcp.pop %v816
        %v880 = vmul.f32 1.0, %v879
        %v881 = vmul.f32 %v657, %v818
        %v882 = vmul.f32 %v658, %v820
        %v883 = vmul.f32 %v659, %v822
        %v884 = vmul.f32 %v660, %v824
        %v885 = vmul.f32 %v661, %v826
        %v886 = vmul.f32 %v662, %v828
        %v887 = vmul.f32 %v663, %v830
        %v888 = vmul.f32 %v664, %v832
        %v889 = vmul.f32 %v665, %v834
        %v890 = vmul.f32 %v666, %v836
        %v891 = vmul.f32 %v667, %v838
        %v892 = vmul.f32 %v668, %v840
        %v893 = vmul.f32 %v669, %v842
        %v894 = vmul.f32 %v670, %v844
        %v895 = vmul.f32 %v671, %v846
        %v896 = vmul.f32 %v672, %v848
        %v897 = vmul.f32 %v673, %v850
        %v898 = vmul.f32 %v674, %v852
        %v899 = vmul.f32 %v675, %v854
        %v900 = vmul.f32 %v676, %v856
        %v901 = vmul.f32 %v677, %v858
        %v902 = vmul.f32 %v678, %v860
        %v903 = vmul.f32 %v679, %v862
        %v904 = vmul.f32 %v680, %v864
        %v905 = vmul.f32 %v681, %v866
        %v906 = vmul.f32 %v682, %v868
        %v907 = vmul.f32 %v683, %v870
        %v908 = vmul.f32 %v684, %v872
        %v909 = vmul.f32 %v685, %v874
        %v910 = vmul.f32 %v686, %v876
        %v911 = vmul.f32 %v687, %v878
        %v912 = vmul.f32 %v688, %v880
        %vm913 = vcmask 31744
        %914 = vst.msk [vmem:[%s253] sm:$0xff] %vm913, %v881
        %915 = vst.msk [vmem:[%s253 + $0x8] sm:$0xff] %vm913, %v882
        %916 = vst.msk [vmem:[%s253 + $0x10] sm:$0xff] %vm913, %v883
        %917 = vst.msk [vmem:[%s253 + $0x18] sm:$0xff] %vm913, %v884
        %918 = vst.msk [vmem:[%s253 + $0x20] sm:$0xff] %vm913, %v885
        %919 = vst.msk [vmem:[%s253 + $0x28] sm:$0xff] %vm913, %v886
        %920 = vst.msk [vmem:[%s253 + $0x30] sm:$0xff] %vm913, %v887
        %921 = vst.msk [vmem:[%s253 + $0x38] sm:$0xff] %vm913, %v888
        %922 = vst.msk [vmem:[%s253 + $0x40] sm:$0xff] %vm913, %v889
        %923 = vst.msk [vmem:[%s253 + $0x48] sm:$0xff] %vm913, %v890
        %924 = vst.msk [vmem:[%s253 + $0x50] sm:$0xff] %vm913, %v891
        %925 = vst.msk [vmem:[%s253 + $0x58] sm:$0xff] %vm913, %v892
        %926 = vst.msk [vmem:[%s253 + $0x60] sm:$0xff] %vm913, %v893
        %927 = vst.msk [vmem:[%s253 + $0x68] sm:$0xff] %vm913, %v894
        %928 = vst.msk [vmem:[%s253 + $0x70] sm:$0xff] %vm913, %v895
        %929 = vst.msk [vmem:[%s253 + $0x78] sm:$0xff] %vm913, %v896
        %930 = vst.msk [vmem:[%s253 + $0x80] sm:$0xff] %vm913, %v897
        %931 = vst.msk [vmem:[%s253 + $0x88] sm:$0xff] %vm913, %v898
        %932 = vst.msk [vmem:[%s253 + $0x90] sm:$0xff] %vm913, %v899
        %933 = vst.msk [vmem:[%s253 + $0x98] sm:$0xff] %vm913, %v900
        %934 = vst.msk [vmem:[%s253 + $0xa0] sm:$0xff] %vm913, %v901
        %935 = vst.msk [vmem:[%s253 + $0xa8] sm:$0xff] %vm913, %v902
        %936 = vst.msk [vmem:[%s253 + $0xb0] sm:$0xff] %vm913, %v903
        %937 = vst.msk [vmem:[%s253 + $0xb8] sm:$0xff] %vm913, %v904
        %938 = vst.msk [vmem:[%s253 + $0xc0] sm:$0xff] %vm913, %v905
        %939 = vst.msk [vmem:[%s253 + $0xc8] sm:$0xff] %vm913, %v906
        %940 = vst.msk [vmem:[%s253 + $0xd0] sm:$0xff] %vm913, %v907
        %941 = vst.msk [vmem:[%s253 + $0xd8] sm:$0xff] %vm913, %v908
        %942 = vst.msk [vmem:[%s253 + $0xe0] sm:$0xff] %vm913, %v909
        %943 = vst.msk [vmem:[%s253 + $0xe8] sm:$0xff] %vm913, %v910
        %944 = vst.msk [vmem:[%s253 + $0xf0] sm:$0xff] %vm913, %v911
        %945 = vst.msk [vmem:[%s253 + $0xf8] sm:$0xff] %vm913, %v912
        %s946 = sand.u32 %s120, 1
        %s947 = scalar_lea.sflag [#allocation4], %s946
        %s948 = sand.u32 %s120, 1
        %s949 = smul.addr %s948, 256
        %s950 = scalar_lea.vmem [#allocation10], %s949
        // Predicated region
        $region53: #{tpu_custom_call.1} parent=35 // pred_check
          %p951 = pneg %p130
        $region54: #{tpu_custom_call.1} parent=35 // pred_check_branch
          %953 = sbr.rel (%p951) target = $region56
        $region55: #{tpu_custom_call.1} parent=35 // pred_region
          %s954 = smul.u32 32, %s23
          %s956 = ssub.s32 4096, 4096
          %957 = vsyncadd %s947, %s956
          %s958 = smul.addr %s954, 128
          %s959 = scalar_lea.hbm %s4, %s958
          %s960 = sshll.u32 %s950, 4
          %s961 = int_to_ptr.vmem [resolvable:$true] %s960
          %966 = dma.vmem_to_hbm [thread:$0]  %s961, 4096, %s959, %s947, 128, 128, 8
        $region56: #{tpu_custom_call.1} parent=35 // pred_fallthru
          _
      $region36: #{tpu_custom_call.1} parent=5 // pred_fallthru
        _
      %p967 = scmp.le.s32.totalorder 2, %s18
      // Predicated region
      $region57: #{tpu_custom_call.1} parent=5 // pred_check
        %p968 = pneg %p967
      $region58: #{tpu_custom_call.1} parent=5 // pred_check_branch
        %970 = sbr.rel (%p968) target = $region60
      $region59: #{tpu_custom_call.1} parent=5 // pred_region
        %s971 = ssub.s32 %s18, 2
        // Predicated region
        $region61: #{tpu_custom_call.1} parent=59 // pred_check
          %p972 = pneg %p136
        $region62: #{tpu_custom_call.1} parent=59 // pred_check_branch
          %974 = sbr.rel (%p972) target = $region64
        $region63: #{tpu_custom_call.1} parent=59 // pred_region
          %s975 = sand.u32 %s121, 1
          %s976 = scalar_lea.sflag [#allocation4], %s975
          %s977 = sand.u32 %s121, 1
          %s978 = smul.addr %s977, 256
          %s979 = scalar_lea.vmem [#allocation10], %s978
          %980 = dma.done %s976, 4096
        $region64: #{tpu_custom_call.1} parent=59 // pred_fallthru
          _
      $region60: #{tpu_custom_call.1} parent=5 // pred_fallthru
        _
    $region6: #{tpu_custom_call.1} parent=1 // loop_footer
      %s22 = sadd.s32 1, %s18
    $region7: #{tpu_custom_call.1} parent=1 // loop_footer_branch
      %17 = sbr.rel target = $region3
    $region8: #{tpu_custom_call.1} parent=1 // loop_exit
      _
    %981 = vsyncpa [#allocation3], 1
    %s982 = scalar_lea.sflag [#allocation3], 1
    %983 = vsyncpa %s982, 1
    %984 = vsyncpa [#allocation6], 1
    %985 = vsyncpa [#allocation9], 1
    %986 = vsyncpa [#allocation4], 1
    %s987 = scalar_lea.sflag [#allocation4], 1
    %988 = vsyncpa %s987, 1

</llo_original>
